<compile_context>
chip_gen: v7x
topology: tpu7x:2x2x1
jax: 0.10.0
libtpu: 0.0.40
codegen_flags: <defaults>
</compile_context>

<pallas_src>
import jax
import jax.numpy as jnp
from jax.experimental import pallas as pl
from jax.experimental.pallas import tpu as pltpu


def _round_up(x, m):
    return ((x + m - 1) // m) * m


def _patch_embed_kernel(x_ref, w_ref, pos_ref, o_ref):
    # x_ref:   (TB, TN, Kp)  bf16 patch pixels (K ordered (c, ph, pw))
    # w_ref:   (Kp, Ep)      bf16 flattened conv weight, transposed
    # pos_ref: (TN, Ep)      f32  positional-encoding rows (+ conv bias folded in)
    # o_ref:   (TB, TN, Ep)  f32  output tokens (class token handled outside)
    tb, tn, kp = x_ref.shape
    ep = o_ref.shape[-1]
    # Collapse (TB, TN) into one M axis: TN is a multiple of 8 and Kp a multiple
    # of 128, so this reshape is layout-preserving (no relayout copy).
    x = x_ref[...].reshape(tb * tn, kp)
    tok = jnp.dot(x, w_ref[...], preferred_element_type=jnp.float32)  # (TB*TN, Ep)
    tok = tok.reshape(tb, tn, ep) + pos_ref[...][None, :, :]
    o_ref[...] = tok.astype(o_ref.dtype)


def patch_embedding_forward(x_nchw, conv_w, conv_b, class_token, pos_encoding,
                            patch_size):
    """x_nchw: [B, C, H, W] float32.  Returns [B, num_patches+1, embed_dim] f32."""
    B, C, H, W = x_nchw.shape
    P = patch_size
    Hp, Wp = H // P, W // P
    N = Hp * Wp
    E = conv_w.shape[0]
    K = C * P * P

    # --- patch extraction: K ordered (c, ph, pw) to match Conv2d OIHW weights ---
    patches = x_nchw.reshape(B, C, Hp, P, Wp, P)
    patches = patches.transpose(0, 2, 4, 1, 3, 5).reshape(B, N, K)

    # --- pad to MXU / lane-friendly shapes ---
    Kp = _round_up(K, 128)
    Ep = _round_up(E, 128)
    TN = min(_round_up(N, 8), 256)               # token-row tile (sublane aligned)
    Np = _round_up(N, TN)

    # Batch tile: aim for ~256-512 matmul rows per step, but cap so the bf16
    # input block (double-buffered) stays comfortably inside scoped VMEM.
    tb_rows = max(1, 512 // TN)
    max_in_block_bytes = 4 << 20                 # 4 MiB per input block
    tb_vmem = max(1, max_in_block_bytes // max(1, TN * Kp * 2))
    TB = max(1, min(B, tb_rows, tb_vmem))
    Bp = _round_up(B, TB)

    patches_p = jnp.pad(patches.astype(jnp.bfloat16),
                        ((0, Bp - B), (0, Np - N), (0, Kp - K)))

    w_mat = conv_w.reshape(E, K).T.astype(jnp.bfloat16)              # (K, E)
    w_p = jnp.pad(w_mat, ((0, Kp - K), (0, Ep - E)))

    # Fold the conv bias into the token rows of the positional encoding.
    pos_full = pos_encoding.reshape(N + 1, E).astype(jnp.float32)
    pos_tok = pos_full[1:, :] + conv_b.reshape(1, E).astype(jnp.float32)
    pos_p = jnp.pad(pos_tok, ((0, Np - N), (0, Ep - E)))

    grid = (Bp // TB, Np // TN)
    out_p = pl.pallas_call(
        _patch_embed_kernel,
        out_shape=jax.ShapeDtypeStruct((Bp, Np, Ep), jnp.float32),
        grid_spec=pltpu.PrefetchScalarGridSpec(
            num_scalar_prefetch=0,
            grid=grid,
            in_specs=[
                pl.BlockSpec((TB, TN, Kp), lambda bi, ni: (bi, ni, 0)),
                pl.BlockSpec((Kp, Ep), lambda bi, ni: (0, 0)),
                pl.BlockSpec((TN, Ep), lambda bi, ni: (ni, 0)),
            ],
            out_specs=pl.BlockSpec((TB, TN, Ep), lambda bi, ni: (bi, ni, 0)),
        ),
        compiler_params=pltpu.CompilerParams(
            dimension_semantics=("parallel", "parallel")),
    )(patches_p, w_p, pos_p)

    tokens = out_p[:B, :N, :E]                                       # (B, N, E)

    # Class-token row (O(B*E)) stays outside the kernel so kernel stores remain
    # sublane/lane dense.
    cls_row = (class_token.reshape(1, 1, E).astype(jnp.float32)
               + pos_full[0:1, :].reshape(1, 1, E))
    cls_row = jnp.broadcast_to(cls_row, (B, 1, E))
    return jnp.concatenate([cls_row, tokens], axis=1)                # (B, N+1, E)


def _reference_forward(x_nchw, conv_w, conv_b, class_token, pos_encoding,
                       patch_size):
    """Pure-JAX f32 reference matching the PyTorch forward (eval mode)."""
    B, C, H, W = x_nchw.shape
    P = patch_size
    Hp, Wp = H // P, W // P
    E = conv_w.shape[0]
    conv = jax.lax.conv_general_dilated(
        x_nchw, conv_w, window_strides=(P, P), padding="VALID",
        dimension_numbers=("NCHW", "OIHW", "NCHW"))
    conv = conv + conv_b.reshape(1, E, 1, 1)
    x = conv.reshape(B, E, Hp * Wp).transpose(0, 2, 1)               # (B, N, E)
    cls = jnp.broadcast_to(class_token, (B, 1, E))
    x = jnp.concatenate([cls, x], axis=1)
    return x + pos_encoding


if __name__ == "__main__":
    # Small shapes: batch=2, channels=4, image 16x16, patch 4, embed_dim=32
    B, C, H, patch_size, embed_dim = 2, 4, 16, 4, 32
    num_patches = (H // patch_size) ** 2 + 1   # 17

    key = jax.random.PRNGKey(0)
    kx, kw, kb, kc, kp = jax.random.split(key, 5)

    x = jax.random.normal(kx, (B, C, H, H), dtype=jnp.float32)
    conv_w = 0.1 * jax.random.normal(
        kw, (embed_dim, C, patch_size, patch_size), dtype=jnp.float32)
    conv_b = 0.1 * jax.random.normal(kb, (embed_dim,), dtype=jnp.float32)
    # Module __init__ uses zeros for these; use small deterministic values to
    # exercise the add/concat paths while keeping shapes identical.
    class_token = 0.02 * jax.random.normal(kc, (1, 1, embed_dim),
                                           dtype=jnp.float32)
    pos_encoding = 0.02 * jax.random.normal(kp, (1, num_patches, embed_dim),
                                            dtype=jnp.float32)

    out = patch_embedding_forward(x, conv_w, conv_b, class_token,
                                  pos_encoding, patch_size)
    out = jax.block_until_ready(out)

    ref = _reference_forward(x, conv_w, conv_b, class_token, pos_encoding,
                             patch_size)
    assert out.shape == (B, num_patches, embed_dim), out.shape
    # Tolerance relaxed vs a pure-f32 path: kernel uses bf16 operands with f32
    # MXU accumulation.
    assert jnp.allclose(out, ref, atol=5e-2, rtol=5e-2), float(
        jnp.max(jnp.abs(out - ref)))

    print("KERNEL_OK")
</pallas_src>

<mosaic_0001>
module attributes {stable_mosaic.version = 11 : i64} {
  func.func @_patch_embed_kernel(%arg0: i32, %arg1: i32, %arg2: memref<2x16x128xbf16, #tpu.memory_space<vmem>>, %arg3: memref<128x128xbf16, #tpu.memory_space<vmem>>, %arg4: memref<16x128xf32, #tpu.memory_space<vmem>>, %arg5: memref<2x16x128xf32, #tpu.memory_space<vmem>>) attributes {dimension_semantics = [#tpu.dimension_semantics<parallel>, #tpu.dimension_semantics<parallel>], iteration_bounds = array<i64: 1, 1>, scalar_prefetch = 0 : i64, scratch_operands = 0 : i64, tpu.core_type = #tpu.core_type<tc>, window_params = [{transform_indices = @transform_0, window_bounds = array<i64: 2, 16, 128>}, {pipeline_mode = #tpu.pipeline_mode<synchronous>, transform_indices = @transform_1, window_bounds = array<i64: 128, 128>}, {transform_indices = @transform_2, window_bounds = array<i64: 16, 128>}, {transform_indices = @transform_3, window_bounds = array<i64: 2, 16, 128>}]} {
    %c0 = arith.constant 0 : index
    %c0_0 = arith.constant 0 : index
    %c0_1 = arith.constant 0 : index
    %0 = vector.load %arg2[%c0, %c0_0, %c0_1] : memref<2x16x128xbf16, #tpu.memory_space<vmem>>, vector<2x16x128xbf16>
    %1 = vector.shape_cast %0 : vector<2x16x128xbf16> to vector<32x128xbf16>
    %c0_2 = arith.constant 0 : index
    %c0_3 = arith.constant 0 : index
    %2 = vector.load %arg3[%c0_2, %c0_3] : memref<128x128xbf16, #tpu.memory_space<vmem>>, vector<128x128xbf16>
    %cst = arith.constant dense<0.000000e+00> : vector<32x128xf32>
    %3 = tpu.matmul %1, %2, %cst {dimension_numbers = #tpu.dot_dimension_numbers<[1], [0], [0], [1], [0, 0, 1, 1], [], []>} : vector<32x128xbf16>, vector<128x128xbf16>, vector<32x128xf32> -> vector<32x128xf32>
    %4 = vector.shape_cast %3 : vector<32x128xf32> to vector<2x16x128xf32>
    %c0_4 = arith.constant 0 : index
    %c0_5 = arith.constant 0 : index
    %5 = vector.load %arg4[%c0_4, %c0_5] : memref<16x128xf32, #tpu.memory_space<vmem>>, vector<16x128xf32>
    %6 = vector.shape_cast %5 : vector<16x128xf32> to vector<1x16x128xf32>
    %7 = vector.broadcast %6 : vector<1x16x128xf32> to vector<2x16x128xf32>
    %8 = arith.addf %4, %7 : vector<2x16x128xf32>
    %c0_6 = arith.constant 0 : index
    %c0_7 = arith.constant 0 : index
    %c0_8 = arith.constant 0 : index
    %9 = vector.load %arg5[%c0_6, %c0_7, %c0_8] : memref<2x16x128xf32, #tpu.memory_space<vmem>>, vector<2x16x128xf32>
    tpu.vector_store %arg5[%c0_6, %c0_7, %c0_8], %8 {strides = array<i32>} : memref<2x16x128xf32, #tpu.memory_space<vmem>>, vector<2x16x128xf32>,
    return
  }
  func.func @transform_0(%arg0: i32, %arg1: i32) -> (i32, i32, i32) {
    %c0_i32 = arith.constant 0 : i32
    %c0_i32_0 = arith.constant 0 : i32
    return %arg0, %arg1, %c0_i32 : i32, i32, i32
  }
  func.func @transform_1(%arg0: i32, %arg1: i32) -> (i32, i32) {
    %c0_i32 = arith.constant 0 : i32
    %c0_i32_0 = arith.constant 0 : i32
    %c0_i32_1 = arith.constant 0 : i32
    return %c0_i32, %c0_i32_0 : i32, i32
  }
  func.func @transform_2(%arg0: i32, %arg1: i32) -> (i32, i32) {
    %c0_i32 = arith.constant 0 : i32
    %c0_i32_0 = arith.constant 0 : i32
    return %arg1, %c0_i32 : i32, i32
  }
  func.func @transform_3(%arg0: i32, %arg1: i32) -> (i32, i32, i32) {
    %c0_i32 = arith.constant 0 : i32
    %c0_i32_0 = arith.constant 0 : i32
    return %arg0, %arg1, %c0_i32 : i32, i32, i32
  }
}

</mosaic_0001>

<llo_original>
// kernel: tpu_custom_call.1
$region0: #{tpu_custom_call.1}
  #allocation0 [shape = 'u32[]', space=smem, size = 0x4, offset = 0x4, fixed_abs, tag = 'smem constant byte address 0x4 - core index']
  #allocation1 [shape = 'u32[144,128]{1,0:T(1,128)}', space=vmem, size = 0x12000, scoped, tag = 'internal scratch']
  %s0 = inlined_call_operand.hbm [shape: bf16[2,16,128], index: 0, kind: input, shape index: {}]
  %s1 = inlined_call_operand.hbm [shape: bf16[128,128], index: 1, kind: input, shape index: {}]
  %s2 = inlined_call_operand.hbm [shape: f32[16,128], index: 2, kind: input, shape index: {}]
  %s3 = inlined_call_operand.hbm [shape: f32[2,16,128], index: 3, kind: output, shape index: {}]
  %s4 = sld [smem:[#allocation0]]
  $region34: #{tpu_custom_call.1} parent=0
    _
  %s6 = ssub.s32 1, %s4
  %s7 = scalar_select 0, %s6, %s4
  $region1: #{tpu_custom_call.1} parent=0
    #allocation2 [shape = 'u8[8192]{0}', space=vmem, size = 0x2000, scoped, tag = 'input window, operand 0, single buffered']
    #allocation3 [shape = 's32[1]{0}', space=sflag, size = 0x4, scoped, tag = 'scoped memory for tpu_custom_call.1']
    #allocation4 [shape = 's32[1]{0}', space=sflag, size = 0x4, scoped, tag = 'scoped memory for tpu_custom_call.1']
    #allocation5 [shape = 'u8[32768]{0}', space=vmem, size = 0x8000, scoped, tag = 'input window, operand 1, single buffered']
    #allocation6 [shape = 's32[1]{0}', space=sflag, size = 0x4, scoped, tag = 'scoped memory for tpu_custom_call.1']
    #allocation7 [shape = 'u8[8192]{0}', space=vmem, size = 0x2000, scoped, tag = 'input window, operand 2, single buffered']
    #allocation8 [shape = 'u8[16384]{0}', space=vmem, size = 0x4000, scoped, tag = 'output window, operand 0, single buffered']
    %8 = vsyncpa [#allocation3], 0
    %9 = vsyncpa [#allocation6], 0
    %10 = vsyncpa [#allocation4], 0
    // Predicated region
    $region2: #{tpu_custom_call.1} parent=1 // pred_check
      _
    $region3: #{tpu_custom_call.1} parent=1 // pred_check_branch
      %12 = sbr.rel (0) target = $region5
    $region4: #{tpu_custom_call.1} parent=1 // pred_region
      %s14 = ssub.s32 256, 256
      %15 = vsyncadd [#allocation3], %s14
      %s16 = sshll.u32 [#allocation2], 4
      %s17 = int_to_ptr.vmem [resolvable:$true] %s16
      %22 = dma.hbm_to_vmem [thread:$0]  %s0, 256, %s17, [#allocation3], 64, 64, 4
    $region5: #{tpu_custom_call.1} parent=1 // pred_fallthru
      _
    // Predicated region
    $region6: #{tpu_custom_call.1} parent=1 // pred_check
      _
    $region7: #{tpu_custom_call.1} parent=1 // pred_check_branch
      %24 = sbr.rel (0) target = $region9
    $region8: #{tpu_custom_call.1} parent=1 // pred_region
      %s26 = ssub.s32 1024, 1024
      %27 = vsyncadd [#allocation6], %s26
      %s28 = sshll.u32 [#allocation5], 4
      %s29 = int_to_ptr.vmem [resolvable:$true] %s28
      %34 = dma.hbm_to_vmem [thread:$0]  %s1, 1024, %s29, [#allocation6], 64, 64, 4
    $region9: #{tpu_custom_call.1} parent=1 // pred_fallthru
      _
    // Predicated region
    $region10: #{tpu_custom_call.1} parent=1 // pred_check
      _
    $region11: #{tpu_custom_call.1} parent=1 // pred_check_branch
      %36 = sbr.rel (0) target = $region13
    $region12: #{tpu_custom_call.1} parent=1 // pred_region
      %s38 = ssub.s32 256, 256
      %39 = vsyncadd [#allocation6], %s38
      %s40 = sshll.u32 [#allocation7], 4
      %s41 = int_to_ptr.vmem [resolvable:$true] %s40
      %46 = dma.hbm_to_vmem [thread:$0]  %s2, 256, %s41, [#allocation6], 128, 128, 8
    $region13: #{tpu_custom_call.1} parent=1 // pred_fallthru
      _
    // Predicated region
    $region14: #{tpu_custom_call.1} parent=1 // pred_check
      _
    $region15: #{tpu_custom_call.1} parent=1 // pred_check_branch
      %48 = sbr.rel (0) target = $region17
    $region16: #{tpu_custom_call.1} parent=1 // pred_region
      %49 = dma.done [#allocation3], 256
    $region17: #{tpu_custom_call.1} parent=1 // pred_fallthru
      _
    // Predicated region
    $region18: #{tpu_custom_call.1} parent=1 // pred_check
      _
    $region19: #{tpu_custom_call.1} parent=1 // pred_check_branch
      %51 = sbr.rel (0) target = $region21
    $region20: #{tpu_custom_call.1} parent=1 // pred_region
      %52 = dma.done [#allocation6], 1024
    $region21: #{tpu_custom_call.1} parent=1 // pred_fallthru
      _
    // Predicated region
    $region22: #{tpu_custom_call.1} parent=1 // pred_check
      _
    $region23: #{tpu_custom_call.1} parent=1 // pred_check_branch
      %54 = sbr.rel (0) target = $region25
    $region24: #{tpu_custom_call.1} parent=1 // pred_region
      %55 = dma.done [#allocation6], 256
    $region25: #{tpu_custom_call.1} parent=1 // pred_fallthru
      _
    %v57 = vld [vmem:[#allocation2] sm:$0xf]
    %v58 = vld [vmem:[#allocation2 + $0x4] sm:$0xf]
    %v59 = vld [vmem:[#allocation2 + $0x8] sm:$0xf]
    %v60 = vld [vmem:[#allocation2 + $0xc] sm:$0xf]
    %v61 = vld [vmem:[#allocation5] sm:$0xf]
    %v62 = vld [vmem:[#allocation5 + $0x4] sm:$0xf]
    %v63 = vld [vmem:[#allocation5 + $0x8] sm:$0xf]
    %v64 = vld [vmem:[#allocation5 + $0xc] sm:$0xf]
    %v65 = vld [vmem:[#allocation5 + $0x10] sm:$0xf]
    %v66 = vld [vmem:[#allocation5 + $0x14] sm:$0xf]
    %v67 = vld [vmem:[#allocation5 + $0x18] sm:$0xf]
    %v68 = vld [vmem:[#allocation5 + $0x1c] sm:$0xf]
    %v69 = vld [vmem:[#allocation5 + $0x20] sm:$0xf]
    %v70 = vld [vmem:[#allocation5 + $0x24] sm:$0xf]
    %v71 = vld [vmem:[#allocation5 + $0x28] sm:$0xf]
    %v72 = vld [vmem:[#allocation5 + $0x2c] sm:$0xf]
    %v73 = vld [vmem:[#allocation5 + $0x30] sm:$0xf]
    %v74 = vld [vmem:[#allocation5 + $0x34] sm:$0xf]
    %v75 = vld [vmem:[#allocation5 + $0x38] sm:$0xf]
    %v76 = vld [vmem:[#allocation5 + $0x3c] sm:$0xf]
    %v81 = vunpack.c.l.b16 %v57
    %v82 = vunpack.c.l.b16 %v58
    %v83 = vunpack.c.l.b16 %v59
    %v84 = vunpack.c.l.b16 %v60
    %v85 = vpack.c.b16 %v82, %v81
    %v86 = vpack.c.b16 %v84, %v83
    %v105 = vunpack.c.l.b16 %v61
    %v106 = vunpack.c.l.b16 %v62
    %v107 = vunpack.c.l.b16 %v63
    %v108 = vunpack.c.l.b16 %v64
    %v109 = vunpack.c.l.b16 %v65
    %v110 = vunpack.c.l.b16 %v66
    %v111 = vunpack.c.l.b16 %v67
    %v112 = vunpack.c.l.b16 %v68
    %v113 = vunpack.c.l.b16 %v69
    %v114 = vunpack.c.l.b16 %v70
    %v115 = vunpack.c.l.b16 %v71
    %v116 = vunpack.c.l.b16 %v72
    %v117 = vunpack.c.l.b16 %v73
    %v118 = vunpack.c.l.b16 %v74
    %v119 = vunpack.c.l.b16 %v75
    %v120 = vunpack.c.l.b16 %v76
    %v121 = vpack.c.b16 %v106, %v105
    %v122 = vpack.c.b16 %v108, %v107
    %v123 = vpack.c.b16 %v110, %v109
    %v124 = vpack.c.b16 %v112, %v111
    %v125 = vpack.c.b16 %v114, %v113
    %v126 = vpack.c.b16 %v116, %v115
    %v127 = vpack.c.b16 %v118, %v117
    %v128 = vpack.c.b16 %v120, %v119
    %137 = vmatprep.subr.bf16.mxu0 0
    %138 = vmatpush1.bf16.msra.mxu0 %v121
    %139 = vmatprep.subr.bf16.mxu0 0
    %140 = vmatpush1.bf16.msra.mxu0 %v122
    %141 = vmatprep.subr.bf16.mxu0 0
    %142 = vmatpush1.bf16.msra.mxu0 %v123
    %143 = vmatprep.subr.bf16.mxu0 0
    %144 = vmatpush1.bf16.msra.mxu0 %v124
    %145 = vmatprep.subr.bf16.mxu0 0
    %146 = vmatpush1.bf16.msra.mxu0 %v125
    %147 = vmatprep.subr.bf16.mxu0 0
    %148 = vmatpush1.bf16.msra.mxu0 %v126
    %149 = vmatprep.subr.bf16.mxu0 0
    %150 = vmatpush1.bf16.msra.mxu0 %v127
    %151 = vmatprep.subr.bf16.mxu0 0
    %152 = vmatpush1.bf16.msra.mxu0 %v128
    %153 = vmatprep.subr.bf16.mxu0 0
    %154 = vmatpush1.bf16.msra.mxu0 0
    %155 = vmatprep.subr.bf16.mxu0 0
    %156 = vmatpush1.bf16.msra.mxu0 0
    %157 = vmatprep.subr.bf16.mxu0 0
    %158 = vmatpush1.bf16.msra.mxu0 0
    %159 = vmatprep.subr.bf16.mxu0 0
    %160 = vmatpush1.bf16.msra.mxu0 0
    %161 = vmatprep.subr.bf16.mxu0 0
    %162 = vmatpush1.bf16.msra.mxu0 0
    %163 = vmatprep.subr.bf16.mxu0 0
    %164 = vmatpush1.bf16.msra.mxu0 0
    %165 = vmatprep.subr.bf16.mxu0 0
    %166 = vmatpush1.bf16.msra.mxu0 0
    %167 = vmatprep.subr.bf16.mxu0 0
    %168 = vmatpush1.bf16.msra.mxu0 0
    %169 = vmatprep.mubr.bf16.mxu0 0
    %170 = vmatmul.mubr.bf16.gmra.mrb[0].mxu0 %v85
    %v171 = vpop.f32.mrb[0].mxu0
    %v172 = vadd.f32 0.0, %v171
    %v173 = vpop.f32.mrb[0].mxu0
    %v174 = vpop.f32.mrb[0].mxu0
    %v175 = vadd.f32 0.0, %v174
    %v176 = vpop.f32.mrb[0].mxu0
    %177 = vmatprep.mubr.bf16.mxu0 0
    %178 = vmatmul.mubr.bf16.gmra.mrb[0].mxu0 %v86
    %v179 = vpop.f32.mrb[0].mxu0
    %v180 = vadd.f32 0.0, %v179
    %v181 = vpop.f32.mrb[0].mxu0
    %v182 = vpop.f32.mrb[0].mxu0
    %v183 = vadd.f32 0.0, %v182
    %v184 = vpop.f32.mrb[0].mxu0
    %185 = vdwg.mxu0
    %v186 = vld [vmem:[#allocation7] sm:$0xff]
    %v187 = vld [vmem:[#allocation7 + $0x8] sm:$0xff]
    %v188 = vadd.f32 %v172, %v186
    %v189 = vadd.f32 %v175, %v187
    %v190 = vadd.f32 %v180, %v186
    %v191 = vadd.f32 %v183, %v187
    %192 = vst [vmem:[#allocation8] sm:$0xff] %v188
    %193 = vst [vmem:[#allocation8 + $0x8] sm:$0xff] %v189
    %194 = vst [vmem:[#allocation8 + $0x10] sm:$0xff] %v190
    %195 = vst [vmem:[#allocation8 + $0x18] sm:$0xff] %v191
    // Predicated region
    $region26: #{tpu_custom_call.1} parent=1 // pred_check
      _
    $region27: #{tpu_custom_call.1} parent=1 // pred_check_branch
      %197 = sbr.rel (0) target = $region29
    $region28: #{tpu_custom_call.1} parent=1 // pred_region
      %s199 = ssub.s32 512, 512
      %200 = vsyncadd [#allocation4], %s199
      %s201 = sshll.u32 [#allocation8], 4
      %s202 = int_to_ptr.vmem [resolvable:$true] %s201
      %207 = dma.vmem_to_hbm [thread:$0]  %s202, 512, %s3, [#allocation4], 128, 128, 8
    $region29: #{tpu_custom_call.1} parent=1 // pred_fallthru
      _
    // Predicated region
    $region30: #{tpu_custom_call.1} parent=1 // pred_check
      _
    $region31: #{tpu_custom_call.1} parent=1 // pred_check_branch
      %209 = sbr.rel (0) target = $region33
    $region32: #{tpu_custom_call.1} parent=1 // pred_region
      %210 = dma.done [#allocation4], 512
    $region33: #{tpu_custom_call.1} parent=1 // pred_fallthru
      _
    %211 = vsyncpa [#allocation3], 1
    %212 = vsyncpa [#allocation6], 1
    %213 = vsyncpa [#allocation4], 1

</llo_original>
